<compile_context>
chip_gen: v6e
topology: v6e:2x2x1
jax: 0.10.0
libtpu: 0.0.40
codegen_flags: <defaults>
</compile_context>

<pallas_src>
import functools

import jax
import jax.numpy as jnp
from jax.experimental import pallas as pl
from jax.experimental.pallas import tpu as pltpu


_VMEM_TILE_BUDGET = 24 * 1024 * 1024   # double-buffered in+out tiles (all gens)
_VMEM_LIMIT_BYTES = 48 * 1024 * 1024   # scoped VMEM; above default, below v7x 64 MiB


def _round_up(x, m):
    return ((x + m - 1) // m) * m


def _pick_tile_rows(rows, in_width, out_width, bytes_per_elem=4):
    """Largest row tile s.t. double-buffered (input + output) tiles fit the budget."""
    per_row = (in_width + out_width) * bytes_per_elem * 2  # x2: double buffering
    tile = max(8, _VMEM_TILE_BUDGET // max(per_row, 1))
    tile = min(tile, 1024)
    # Keep >= 4 grid steps when the problem is big enough, so the single
    # parallel grid axis can shard across v7x's 2 TensorCores.
    if rows >= 32:
        tile = min(tile, rows // 4)
    tile = max(8, (tile // 8) * 8)          # (8,128) sublane alignment
    tile = min(tile, _round_up(rows, 8))    # don't over-pad tiny inputs
    return tile


def _layernorm_stats(x_f32, eps):
    """One-pass mean/var (biased, like torch.nn.LayerNorm), f32 accumulation."""
    d = x_f32.shape[-1]
    s1 = jnp.sum(x_f32, axis=-1, keepdims=True)
    s2 = jnp.sum(x_f32 * x_f32, axis=-1, keepdims=True)
    mean = s1 / d
    var = jnp.maximum(s2 / d - mean * mean, 0.0)
    inv = jax.lax.rsqrt(var + eps)
    return mean, inv


# --------------------------------------------------------------------------
# Fused kernel: LayerNorm + affine + (y @ W + b)
# --------------------------------------------------------------------------
def _prenorm_linear_kernel(x_ref, gamma_ref, beta_ref, w_ref, b_ref, o_ref, *, eps):
    x = x_ref[...].astype(jnp.float32)                       # (tile_rows, D)
    mean, inv = _layernorm_stats(x, eps)
    y = (x - mean) * inv
    y = y * gamma_ref[...] + beta_ref[...]                    # gamma/beta already f32
    out = jnp.dot(y, w_ref[...].astype(jnp.float32),
                  preferred_element_type=jnp.float32)         # MXU
    out = out + b_ref[...]
    o_ref[...] = out.astype(o_ref.dtype)


def prenorm_linear_pallas(x, gamma, beta, w, b, *, eps=1e-5):
    """PreNorm with a linear fn, fully fused: (LayerNorm(x) @ w + b)."""
    orig_shape = x.shape
    d = orig_shape[-1]
    n = w.shape[-1]
    x2 = x.reshape(-1, d)
    rows = x2.shape[0]

    tile_rows = _pick_tile_rows(rows, d, n)
    padded_rows = _round_up(rows, tile_rows)
    if padded_rows != rows:
        x2 = jnp.pad(x2, ((0, padded_rows - rows), (0, 0)))

    gamma2 = gamma.reshape(1, d).astype(jnp.float32)
    beta2 = beta.reshape(1, d).astype(jnp.float32)
    b2 = b.reshape(1, n).astype(jnp.float32)

    grid = (padded_rows // tile_rows,)
    out = pl.pallas_call(
        functools.partial(_prenorm_linear_kernel, eps=eps),
        out_shape=jax.ShapeDtypeStruct((padded_rows, n), x.dtype),
        grid_spec=pltpu.PrefetchScalarGridSpec(
            num_scalar_prefetch=0,
            grid=grid,
            in_specs=[
                pl.BlockSpec((tile_rows, d), lambda i: (i, 0)),
                pl.BlockSpec((1, d), lambda i: (0, 0)),
                pl.BlockSpec((1, d), lambda i: (0, 0)),
                pl.BlockSpec((d, n), lambda i: (0, 0)),
                pl.BlockSpec((1, n), lambda i: (0, 0)),
            ],
            out_specs=pl.BlockSpec((tile_rows, n), lambda i: (i, 0)),
        ),
        compiler_params=pltpu.CompilerParams(
            dimension_semantics=("parallel",),
            vmem_limit_bytes=_VMEM_LIMIT_BYTES,
        ),
    )(x2, gamma2, beta2, w, b2)
    out = out[:rows]
    return out.reshape(*orig_shape[:-1], n)


# --------------------------------------------------------------------------
# Standalone LayerNorm kernel (for arbitrary `fn`)
# --------------------------------------------------------------------------
def _layernorm_kernel(x_ref, gamma_ref, beta_ref, o_ref, *, eps):
    x = x_ref[...].astype(jnp.float32)
    mean, inv = _layernorm_stats(x, eps)
    y = (x - mean) * inv
    y = y * gamma_ref[...] + beta_ref[...]
    o_ref[...] = y.astype(o_ref.dtype)


def layernorm_pallas(x, gamma, beta, *, eps=1e-5):
    """LayerNorm over the last dim of x (any leading dims, any row count)."""
    orig_shape = x.shape
    d = orig_shape[-1]
    x2 = x.reshape(-1, d)
    rows = x2.shape[0]

    tile_rows = _pick_tile_rows(rows, d, d)
    padded_rows = _round_up(rows, tile_rows)
    if padded_rows != rows:
        x2 = jnp.pad(x2, ((0, padded_rows - rows), (0, 0)))

    gamma2 = gamma.reshape(1, d).astype(jnp.float32)
    beta2 = beta.reshape(1, d).astype(jnp.float32)

    grid = (padded_rows // tile_rows,)
    out = pl.pallas_call(
        functools.partial(_layernorm_kernel, eps=eps),
        out_shape=jax.ShapeDtypeStruct((padded_rows, d), x.dtype),
        grid_spec=pltpu.PrefetchScalarGridSpec(
            num_scalar_prefetch=0,
            grid=grid,
            in_specs=[
                pl.BlockSpec((tile_rows, d), lambda i: (i, 0)),
                pl.BlockSpec((1, d), lambda i: (0, 0)),
                pl.BlockSpec((1, d), lambda i: (0, 0)),
            ],
            out_specs=pl.BlockSpec((tile_rows, d), lambda i: (i, 0)),
        ),
        compiler_params=pltpu.CompilerParams(
            dimension_semantics=("parallel",),
            vmem_limit_bytes=_VMEM_LIMIT_BYTES,
        ),
    )(x2, gamma2, beta2)
    return out[:rows].reshape(orig_shape)


def prenorm(x, gamma, beta, fn, **kwargs):
    """PreNorm.forward for an arbitrary JAX fn: fn(LayerNorm(x), **kwargs)."""
    # TODO(synk): arbitrary `fn` cannot be fused in general; use
    # prenorm_linear_pallas when fn is a linear projection.
    return fn(layernorm_pallas(x, gamma, beta), **kwargs)


if __name__ == "__main__":
    # Small shapes; D chosen as 128 so the feature dim is lane-dense and
    # MXU-aligned (review item) while staying tiny.
    B, S, D = 2, 8, 128
    key = jax.random.PRNGKey(0)
    kx, kg, kb, kw, kbias = jax.random.split(key, 5)

    x = jax.random.normal(kx, (B, S, D), dtype=jnp.float32)
    gamma = 1.0 + 0.1 * jax.random.normal(kg, (D,), dtype=jnp.float32)
    beta = 0.1 * jax.random.normal(kb, (D,), dtype=jnp.float32)
    w = jax.random.normal(kw, (D, D), dtype=jnp.float32) / jnp.sqrt(D)
    bias = 0.1 * jax.random.normal(kbias, (D,), dtype=jnp.float32)

    eps = 1e-5

    # Plain-JAX reference (torch.nn.LayerNorm semantics: biased var, eps inside sqrt).
    mean = jnp.mean(x, axis=-1, keepdims=True)
    var = jnp.mean((x - mean) ** 2, axis=-1, keepdims=True)
    ln_ref = ((x - mean) / jnp.sqrt(var + eps)) * gamma + beta

    # 1) Fused PreNorm + linear fn.
    out_fused = prenorm_linear_pallas(x, gamma, beta, w, bias, eps=eps)
    jax.block_until_ready(out_fused)
    ref_fused = ln_ref @ w + bias
    assert jnp.allclose(out_fused, ref_fused, atol=1e-4, rtol=1e-4), \
        "fused prenorm+linear mismatch vs reference"

    # 2) General path: standalone LayerNorm kernel + arbitrary fn.
    fn = lambda y: jnp.tanh(y) * 2.0
    out_gen = prenorm(x, gamma, beta, fn)
    jax.block_until_ready(out_gen)
    ref_gen = fn(ln_ref)
    assert jnp.allclose(out_gen, ref_gen, atol=1e-5, rtol=1e-5), \
        "general prenorm mismatch vs reference"

    print("KERNEL_OK")
</pallas_src>

<mosaic_0001>
module attributes {stable_mosaic.version = 11 : i64} {
  func.func @_prenorm_linear_kernel(%arg0: i32, %arg1: memref<16x128xf32, #tpu.memory_space<vmem>>, %arg2: memref<1x128xf32, #tpu.memory_space<vmem>>, %arg3: memref<1x128xf32, #tpu.memory_space<vmem>>, %arg4: memref<128x128xf32, #tpu.memory_space<vmem>>, %arg5: memref<1x128xf32, #tpu.memory_space<vmem>>, %arg6: memref<16x128xf32, #tpu.memory_space<vmem>>) attributes {dimension_semantics = [#tpu.dimension_semantics<parallel>], iteration_bounds = array<i64: 1>, scalar_prefetch = 0 : i64, scratch_operands = 0 : i64, tpu.core_type = #tpu.core_type<tc>, window_params = [{transform_indices = @transform_0, window_bounds = array<i64: 16, 128>}, {pipeline_mode = #tpu.pipeline_mode<synchronous>, transform_indices = @transform_1, window_bounds = array<i64: 1, 128>}, {pipeline_mode = #tpu.pipeline_mode<synchronous>, transform_indices = @transform_2, window_bounds = array<i64: 1, 128>}, {pipeline_mode = #tpu.pipeline_mode<synchronous>, transform_indices = @transform_3, window_bounds = array<i64: 128, 128>}, {pipeline_mode = #tpu.pipeline_mode<synchronous>, transform_indices = @transform_4, window_bounds = array<i64: 1, 128>}, {transform_indices = @transform_5, window_bounds = array<i64: 16, 128>}]} {
    %c0 = arith.constant 0 : index
    %c0_0 = arith.constant 0 : index
    %0 = vector.load %arg1[%c0, %c0_0] : memref<16x128xf32, #tpu.memory_space<vmem>>, vector<16x128xf32>
    %cst = arith.constant dense<0.000000e+00> : vector<16xf32>
    %1 = vector.multi_reduction <add>, %0, %cst [1] : vector<16x128xf32> to vector<16xf32>
    %2 = vector.shape_cast %1 : vector<16xf32> to vector<16x1xf32>
    %3 = arith.mulf %0, %0 : vector<16x128xf32>
    %cst_1 = arith.constant dense<0.000000e+00> : vector<16xf32>
    %4 = vector.multi_reduction <add>, %3, %cst_1 [1] : vector<16x128xf32> to vector<16xf32>
    %5 = vector.shape_cast %4 : vector<16xf32> to vector<16x1xf32>
    %cst_2 = arith.constant 1.280000e+02 : f32
    %6 = vector.broadcast %cst_2 : f32 to vector<16x1xf32>
    %7 = arith.divf %2, %6 : vector<16x1xf32>
    %cst_3 = arith.constant 1.280000e+02 : f32
    %8 = vector.broadcast %cst_3 : f32 to vector<16x1xf32>
    %9 = arith.divf %5, %8 : vector<16x1xf32>
    %10 = arith.mulf %7, %7 : vector<16x1xf32>
    %11 = arith.subf %9, %10 : vector<16x1xf32>
    %cst_4 = arith.constant 0.000000e+00 : f32
    %12 = vector.broadcast %cst_4 : f32 to vector<16x1xf32>
    %13 = arith.maximumf %11, %12 : vector<16x1xf32>
    %cst_5 = arith.constant 9.99999974E-6 : f32
    %14 = vector.broadcast %cst_5 : f32 to vector<16x1xf32>
    %15 = arith.addf %13, %14 : vector<16x1xf32>
    %16 = math.rsqrt %15 : vector<16x1xf32>
    %17 = vector.broadcast %7 : vector<16x1xf32> to vector<16x128xf32>
    %18 = arith.subf %0, %17 : vector<16x128xf32>
    %19 = vector.broadcast %16 : vector<16x1xf32> to vector<16x128xf32>
    %20 = arith.mulf %18, %19 : vector<16x128xf32>
    %c0_6 = arith.constant 0 : index
    %c0_7 = arith.constant 0 : index
    %21 = vector.load %arg2[%c0_6, %c0_7] : memref<1x128xf32, #tpu.memory_space<vmem>>, vector<1x128xf32>
    %22 = vector.broadcast %21 : vector<1x128xf32> to vector<16x128xf32>
    %23 = arith.mulf %20, %22 : vector<16x128xf32>
    %c0_8 = arith.constant 0 : index
    %c0_9 = arith.constant 0 : index
    %24 = vector.load %arg3[%c0_8, %c0_9] : memref<1x128xf32, #tpu.memory_space<vmem>>, vector<1x128xf32>
    %25 = vector.broadcast %24 : vector<1x128xf32> to vector<16x128xf32>
    %26 = arith.addf %23, %25 : vector<16x128xf32>
    %c0_10 = arith.constant 0 : index
    %c0_11 = arith.constant 0 : index
    %27 = vector.load %arg4[%c0_10, %c0_11] : memref<128x128xf32, #tpu.memory_space<vmem>>, vector<128x128xf32>
    %cst_12 = arith.constant dense<0.000000e+00> : vector<16x128xf32>
    %28 = tpu.matmul %26, %27, %cst_12 {dimension_numbers = #tpu.dot_dimension_numbers<[1], [0], [0], [1], [0, 0, 1, 1], [], []>} : vector<16x128xf32>, vector<128x128xf32>, vector<16x128xf32> -> vector<16x128xf32>
    %c0_13 = arith.constant 0 : index
    %c0_14 = arith.constant 0 : index
    %29 = vector.load %arg5[%c0_13, %c0_14] : memref<1x128xf32, #tpu.memory_space<vmem>>, vector<1x128xf32>
    %30 = vector.broadcast %29 : vector<1x128xf32> to vector<16x128xf32>
    %31 = arith.addf %28, %30 : vector<16x128xf32>
    %c0_15 = arith.constant 0 : index
    %c0_16 = arith.constant 0 : index
    %32 = vector.load %arg6[%c0_15, %c0_16] : memref<16x128xf32, #tpu.memory_space<vmem>>, vector<16x128xf32>
    tpu.vector_store %arg6[%c0_15, %c0_16], %31 {strides = array<i32>} : memref<16x128xf32, #tpu.memory_space<vmem>>, vector<16x128xf32>,
    return
  }
  func.func @transform_0(%arg0: i32) -> (i32, i32) {
    %c0_i32 = arith.constant 0 : i32
    %c0_i32_0 = arith.constant 0 : i32
    return %arg0, %c0_i32 : i32, i32
  }
  func.func @transform_1(%arg0: i32) -> (i32, i32) {
    %c0_i32 = arith.constant 0 : i32
    %c0_i32_0 = arith.constant 0 : i32
    %c0_i32_1 = arith.constant 0 : i32
    return %c0_i32, %c0_i32_0 : i32, i32
  }
  func.func @transform_2(%arg0: i32) -> (i32, i32) {
    %c0_i32 = arith.constant 0 : i32
    %c0_i32_0 = arith.constant 0 : i32
    %c0_i32_1 = arith.constant 0 : i32
    return %c0_i32, %c0_i32_0 : i32, i32
  }
  func.func @transform_3(%arg0: i32) -> (i32, i32) {
    %c0_i32 = arith.constant 0 : i32
    %c0_i32_0 = arith.constant 0 : i32
    %c0_i32_1 = arith.constant 0 : i32
    return %c0_i32, %c0_i32_0 : i32, i32
  }
  func.func @transform_4(%arg0: i32) -> (i32, i32) {
    %c0_i32 = arith.constant 0 : i32
    %c0_i32_0 = arith.constant 0 : i32
    %c0_i32_1 = arith.constant 0 : i32
    return %c0_i32, %c0_i32_0 : i32, i32
  }
  func.func @transform_5(%arg0: i32) -> (i32, i32) {
    %c0_i32 = arith.constant 0 : i32
    %c0_i32_0 = arith.constant 0 : i32
    return %arg0, %c0_i32 : i32, i32
  }
}

</mosaic_0001>

<llo_original>
// kernel: tpu_custom_call.1
$region0: #{tpu_custom_call.1}
  #allocation0 [shape = 'u32[]', space=smem, size = 0x4, offset = 0x4, fixed_abs, tag = 'smem constant byte address 0x4 - core index']
  #allocation1 [shape = 'u32[144,128]{1,0:T(1,128)}', space=vmem, size = 0x12000, scoped, tag = 'internal scratch']
  %s0 = inlined_call_operand.hbm [shape: f32[16,128], index: 0, kind: input, shape index: {}]
  %s1 = inlined_call_operand.vmem [shape: f32[1,128], index: 1, kind: input, shape index: {}]
  %s2 = inlined_call_operand.vmem [shape: f32[1,128], index: 2, kind: input, shape index: {}]
  %s3 = inlined_call_operand.hbm [shape: f32[128,128], index: 3, kind: input, shape index: {}]
  %s4 = inlined_call_operand.vmem [shape: f32[1,128], index: 4, kind: input, shape index: {}]
  %s5 = inlined_call_operand.hbm [shape: f32[16,128], index: 5, kind: output, shape index: {}]
  %s6 = sld [smem:[#allocation0]]
  $region38: #{tpu_custom_call.1} parent=0
    _
  %s8 = ssub.s32 1, %s6
  %s9 = scalar_select 0, %s8, %s6
  $region1: #{tpu_custom_call.1} parent=0
    #allocation2 [shape = 'u8[8192]{0}', space=vmem, size = 0x2000, scoped, tag = 'input window, operand 0, single buffered']
    #allocation3 [shape = 's32[1]{0}', space=sflag, size = 0x4, scoped, tag = 'scoped memory for tpu_custom_call.1']
    #allocation4 [shape = 's32[1]{0}', space=sflag, size = 0x4, scoped, tag = 'scoped memory for tpu_custom_call.1']
    #allocation5 [shape = 'u8[65536]{0}', space=vmem, size = 0x10000, scoped, tag = 'input window, operand 3, single buffered']
    #allocation6 [shape = 's32[1]{0}', space=sflag, size = 0x4, scoped, tag = 'scoped memory for tpu_custom_call.1']
    #allocation7 [shape = 'u8[8192]{0}', space=vmem, size = 0x2000, scoped, tag = 'output window, operand 0, single buffered']
    %10 = vsyncpa [#allocation3], 0
    %11 = vsyncpa [#allocation6], 0
    %12 = vsyncpa [#allocation4], 0
    // Predicated region
    $region2: #{tpu_custom_call.1} parent=1 // pred_check
      _
    $region3: #{tpu_custom_call.1} parent=1 // pred_check_branch
      %14 = sbr.rel (0) target = $region5
    $region4: #{tpu_custom_call.1} parent=1 // pred_region
      %s16 = ssub.s32 256, 256
      %17 = vsyncadd [#allocation3], %s16
      %s18 = sshll.u32 [#allocation2], 4
      %s19 = int_to_ptr.vmem [resolvable:$true] %s18
      %24 = dma.hbm_to_vmem [thread:$0]  %s0, 256, %s19, [#allocation3], 128, 128, 8
    $region5: #{tpu_custom_call.1} parent=1 // pred_fallthru
      _
    // Predicated region
    $region6: #{tpu_custom_call.1} parent=1 // pred_check
      _
    $region7: #{tpu_custom_call.1} parent=1 // pred_check_branch
      %26 = sbr.rel (0) target = $region9
    $region8: #{tpu_custom_call.1} parent=1 // pred_region
      _
    $region9: #{tpu_custom_call.1} parent=1 // pred_fallthru
      _
    // Predicated region
    $region10: #{tpu_custom_call.1} parent=1 // pred_check
      _
    $region11: #{tpu_custom_call.1} parent=1 // pred_check_branch
      %28 = sbr.rel (0) target = $region13
    $region12: #{tpu_custom_call.1} parent=1 // pred_region
      _
    $region13: #{tpu_custom_call.1} parent=1 // pred_fallthru
      _
    // Predicated region
    $region14: #{tpu_custom_call.1} parent=1 // pred_check
      _
    $region15: #{tpu_custom_call.1} parent=1 // pred_check_branch
      %30 = sbr.rel (0) target = $region17
    $region16: #{tpu_custom_call.1} parent=1 // pred_region
      %s32 = ssub.s32 2048, 2048
      %33 = vsyncadd [#allocation6], %s32
      %s34 = sshll.u32 [#allocation5], 4
      %s35 = int_to_ptr.vmem [resolvable:$true] %s34
      %40 = dma.hbm_to_vmem [thread:$0]  %s3, 2048, %s35, [#allocation6], 128, 128, 8
    $region17: #{tpu_custom_call.1} parent=1 // pred_fallthru
      _
    // Predicated region
    $region18: #{tpu_custom_call.1} parent=1 // pred_check
      _
    $region19: #{tpu_custom_call.1} parent=1 // pred_check_branch
      %42 = sbr.rel (0) target = $region21
    $region20: #{tpu_custom_call.1} parent=1 // pred_region
      _
    $region21: #{tpu_custom_call.1} parent=1 // pred_fallthru
      _
    // Predicated region
    $region22: #{tpu_custom_call.1} parent=1 // pred_check
      _
    $region23: #{tpu_custom_call.1} parent=1 // pred_check_branch
      %44 = sbr.rel (0) target = $region25
    $region24: #{tpu_custom_call.1} parent=1 // pred_region
      %45 = dma.done [#allocation3], 256
    $region25: #{tpu_custom_call.1} parent=1 // pred_fallthru
      _
    // Predicated region
    $region26: #{tpu_custom_call.1} parent=1 // pred_check
      _
    $region27: #{tpu_custom_call.1} parent=1 // pred_check_branch
      %47 = sbr.rel (0) target = $region29
    $region28: #{tpu_custom_call.1} parent=1 // pred_region
      %48 = dma.done [#allocation6], 2048
    $region29: #{tpu_custom_call.1} parent=1 // pred_fallthru
      _
    %v49 = vld [vmem:[#allocation2] sm:$0xff]
    %v50 = vld [vmem:[#allocation2 + $0x8] sm:$0xff]
    %51 = vadd.xlane.f32.xlu0 %v49
    %v52 = vpop.xlane.xlu0 %51
    %53 = vadd.xlane.f32.xlu0 %v50
    %v54 = vpop.xlane.xlu0 %53
    %v55 = vmul.f32 %v49, %v49
    %v56 = vmul.f32 %v50, %v50
    %57 = vadd.xlane.f32.xlu0 %v55
    %v58 = vpop.xlane.xlu0 %57
    %59 = vadd.xlane.f32.xlu0 %v56
    %v60 = vpop.xlane.xlu0 %59
    %v61 = vrcp.pop 128.0
    %v62 = vmul.f32 %v52, %v61
    %v63 = vmul.f32 %v54, %v61
    %v64 = vmul.f32 %v58, %v61
    %v65 = vmul.f32 %v60, %v61
    %v66 = vmul.f32 %v62, %v62
    %v67 = vmul.f32 %v63, %v63
    %v68 = vsub.f32 %v64, %v66
    %v69 = vsub.f32 %v65, %v67
    %v70 = vmax.f32 %v68, 0.0
    %v71 = vmax.f32 %v69, 0.0
    %v72 = vadd.f32 %v70, 1e-05
    %v73 = vadd.f32 %v71, 1e-05
    %v74 = vrsqrt.pop %v72
    %v75 = vrsqrt.pop %v73
    %v76 = vsub.f32 %v49, %v62
    %v77 = vsub.f32 %v50, %v63
    %v78 = vmul.f32 %v76, %v74
    %v79 = vmul.f32 %v77, %v75
    %v80 = vld [vmem:[%s1] sm:$0x1]
    %v82 = vlaneseq
    %v83 = vshrl.u32 %v82, 7
    %v84 = vsub.s32 0, %v83
    %v85 = vrot.slane %v80, %v84
    %v87 = vmul.f32 %v78, %v85
    %v88 = vmul.f32 %v79, %v85
    %v89 = vld [vmem:[%s2] sm:$0x1]
    %v91 = vlaneseq
    %v92 = vshrl.u32 %v91, 7
    %v93 = vsub.s32 0, %v92
    %v94 = vrot.slane %v89, %v93
    %v96 = vadd.f32 %v87, %v94
    %v97 = vadd.f32 %v88, %v94
    %v98 = vld [vmem:[#allocation5] sm:$0xff]
    %v99 = vld [vmem:[#allocation5 + $0x8] sm:$0xff]
    %v100 = vld [vmem:[#allocation5 + $0x10] sm:$0xff]
    %v101 = vld [vmem:[#allocation5 + $0x18] sm:$0xff]
    %v102 = vld [vmem:[#allocation5 + $0x20] sm:$0xff]
    %v103 = vld [vmem:[#allocation5 + $0x28] sm:$0xff]
    %v104 = vld [vmem:[#allocation5 + $0x30] sm:$0xff]
    %v105 = vld [vmem:[#allocation5 + $0x38] sm:$0xff]
    %v106 = vld [vmem:[#allocation5 + $0x40] sm:$0xff]
    %v107 = vld [vmem:[#allocation5 + $0x48] sm:$0xff]
    %v108 = vld [vmem:[#allocation5 + $0x50] sm:$0xff]
    %v109 = vld [vmem:[#allocation5 + $0x58] sm:$0xff]
    %v110 = vld [vmem:[#allocation5 + $0x60] sm:$0xff]
    %v111 = vld [vmem:[#allocation5 + $0x68] sm:$0xff]
    %v112 = vld [vmem:[#allocation5 + $0x70] sm:$0xff]
    %v113 = vld [vmem:[#allocation5 + $0x78] sm:$0xff]
    %v114 = vld [vmem:[%s4] sm:$0x1]
    %v116 = vlaneseq
    %v117 = vshrl.u32 %v116, 7
    %v118 = vsub.s32 0, %v117
    %v119 = vrot.slane %v114, %v118
    %121 = vmatprep.subr.mxu0 0.0
    %122 = vmatpush1.msra.mxu0 %v113
    %123 = vmatprep.subr.mxu0 0.0
    %124 = vmatpush1.msra.mxu0 %v112
    %125 = vmatprep.subr.mxu0 0.0
    %126 = vmatpush1.msra.mxu0 %v111
    %127 = vmatprep.subr.mxu0 0.0
    %128 = vmatpush1.msra.mxu0 %v110
    %129 = vmatprep.subr.mxu0 0.0
    %130 = vmatpush1.msra.mxu0 %v109
    %131 = vmatprep.subr.mxu0 0.0
    %132 = vmatpush1.msra.mxu0 %v108
    %133 = vmatprep.subr.mxu0 0.0
    %134 = vmatpush1.msra.mxu0 %v107
    %135 = vmatprep.subr.mxu0 0.0
    %136 = vmatpush1.msra.mxu0 %v106
    %137 = vmatprep.subr.mxu0 0.0
    %138 = vmatpush1.msra.mxu0 %v105
    %139 = vmatprep.subr.mxu0 0.0
    %140 = vmatpush1.msra.mxu0 %v104
    %141 = vmatprep.subr.mxu0 0.0
    %142 = vmatpush1.msra.mxu0 %v103
    %143 = vmatprep.subr.mxu0 0.0
    %144 = vmatpush1.msra.mxu0 %v102
    %145 = vmatprep.subr.mxu0 0.0
    %146 = vmatpush1.msra.mxu0 %v101
    %147 = vmatprep.subr.mxu0 0.0
    %148 = vmatpush1.msra.mxu0 %v100
    %149 = vmatprep.subr.mxu0 0.0
    %150 = vmatpush1.msra.mxu0 %v99
    %151 = vmatprep.subr.mxu0 0.0
    %152 = vmatpush1.msra.mxu0 %v98
    %153 = vmatprep.subr.mxu0 0.0
    %154 = vmatpush2.msra.mxu0 0.0
    %155 = vmatprep.subr.mxu0 0.0
    %156 = vmatpush2.msra.mxu0 0.0
    %157 = vmatprep.subr.mxu0 0.0
    %158 = vmatpush2.msra.mxu0 0.0
    %159 = vmatprep.subr.mxu0 0.0
    %160 = vmatpush2.msra.mxu0 0.0
    %161 = vmatprep.subr.mxu0 0.0
    %162 = vmatpush2.msra.mxu0 0.0
    %163 = vmatprep.subr.mxu0 0.0
    %164 = vmatpush2.msra.mxu0 0.0
    %165 = vmatprep.subr.mxu0 0.0
    %166 = vmatpush2.msra.mxu0 0.0
    %167 = vmatprep.subr.mxu0 0.0
    %168 = vmatpush2.msra.mxu0 0.0
    %169 = vmatprep.subr.mxu0 0.0
    %170 = vmatpush2.msra.mxu0 0.0
    %171 = vmatprep.subr.mxu0 0.0
    %172 = vmatpush2.msra.mxu0 0.0
    %173 = vmatprep.subr.mxu0 0.0
    %174 = vmatpush2.msra.mxu0 0.0
    %175 = vmatprep.subr.mxu0 0.0
    %176 = vmatpush2.msra.mxu0 0.0
    %177 = vmatprep.subr.mxu0 0.0
    %178 = vmatpush2.msra.mxu0 0.0
    %179 = vmatprep.subr.mxu0 0.0
    %180 = vmatpush2.msra.mxu0 0.0
    %181 = vmatprep.subr.mxu0 0.0
    %182 = vmatpush2.msra.mxu0 0.0
    %183 = vmatprep.subr.mxu0 0.0
    %184 = vmatpush2.msra.mxu0 0.0
    %185 = vmatprep.mubr.f32.mxu0 0.0
    %186 = vmatmul.mubr.f32.gmra.mxu0 %v96
    %v187 = vpop.f32.mrf.mxu0
    %v188 = vadd.f32 %v119, %v187
    %v189 = vpop.f32.mrf.mxu0
    %190 = vmatprep.mubr.f32.mxu0 0.0
    %191 = vmatmul.mubr.f32.gmra.mxu0 %v97
    %v192 = vpop.f32.mrf.mxu0
    %v193 = vadd.f32 %v119, %v192
    %v194 = vpop.f32.mrf.mxu0
    %195 = vdwg.mxu0
    %196 = vst [vmem:[#allocation7] sm:$0xff] %v188
    %197 = vst [vmem:[#allocation7 + $0x8] sm:$0xff] %v193
    // Predicated region
    $region30: #{tpu_custom_call.1} parent=1 // pred_check
      _
    $region31: #{tpu_custom_call.1} parent=1 // pred_check_branch
      %199 = sbr.rel (0) target = $region33
    $region32: #{tpu_custom_call.1} parent=1 // pred_region
      %s201 = ssub.s32 256, 256
      %202 = vsyncadd [#allocation4], %s201
      %s203 = sshll.u32 [#allocation7], 4
      %s204 = int_to_ptr.vmem [resolvable:$true] %s203
      %209 = dma.vmem_to_hbm [thread:$0]  %s204, 256, %s5, [#allocation4], 128, 128, 8
    $region33: #{tpu_custom_call.1} parent=1 // pred_fallthru
      _
    // Predicated region
    $region34: #{tpu_custom_call.1} parent=1 // pred_check
      _
    $region35: #{tpu_custom_call.1} parent=1 // pred_check_branch
      %211 = sbr.rel (0) target = $region37
    $region36: #{tpu_custom_call.1} parent=1 // pred_region
      %212 = dma.done [#allocation4], 256
    $region37: #{tpu_custom_call.1} parent=1 // pred_fallthru
      _
    %213 = vsyncpa [#allocation3], 1
    %214 = vsyncpa [#allocation6], 1
    %215 = vsyncpa [#allocation4], 1

</llo_original>
